<compile_context>
chip_gen: v7x
topology: tpu7x:2x2x1
jax: 0.10.0
libtpu: 0.0.40
codegen_flags: <defaults>
</compile_context>

<pallas_src>
import jax
import jax.numpy as jnp
from jax.experimental import pallas as pl
from jax.experimental.pallas import tpu as pltpu


def _fused_affine_kernel(params_ref, xT_ref, o_ref):
    # params_ref: SMEM (3,) f32 = [W[0,0], W[1,0], b]   (fused layer-1+layer-2)
    # xT_ref:     VMEM (2, TN)  -- batch on lanes
    # o_ref:      VMEM (1, TN)  -- lane-dense output
    w0 = params_ref[0]
    w1 = params_ref[1]
    b = params_ref[2]
    x0 = xT_ref[0:1, :]          # (1, TN)
    x1 = xT_ref[1:2, :]          # (1, TN)
    # Pure VPU broadcast-FMA; the kernel is load -> fma -> store (HBM bound).
    o_ref[...] = x0 * w0 + x1 * w1 + b


def circle_model_v0(x, w1, b1, w2, b2, *, tn=2048):
    """Forward pass of CircleModelV0.  x: (N, 2) f32 -> (N, 1) f32."""
    n = x.shape[0]

    # --- Fuse the two affine layers (exact: no nonlinearity in between). ---
    W = w1 @ w2                              # (2, 1)
    b = b1 @ w2 + b2                         # (1, 1)
    params = jnp.concatenate([W[:, 0], b[0]]).astype(jnp.float32)   # (3,)

    # --- Batch-on-lanes layout: pad N up to a multiple of the tile width. ---
    n128 = ((n + 127) // 128) * 128          # lane-align the batch axis
    tn = max(128, min(tn, n128))             # tile width (multiple of 128)
    n_pad = ((n128 + tn - 1) // tn) * tn     # total padded batch
    x_pad = jnp.pad(x.astype(jnp.float32), ((0, n_pad - n), (0, 0)))  # (n_pad, 2)
    xT = x_pad.T                                                      # (2, n_pad)

    grid = (n_pad // tn,)
    outT = pl.pallas_call(
        _fused_affine_kernel,
        out_shape=jax.ShapeDtypeStruct((1, n_pad), jnp.float32),
        grid=grid,
        in_specs=[
            # Tiny fused params: whole (3,) array in SMEM, read as scalars.
            pl.BlockSpec(memory_space=pltpu.MemorySpace.SMEM),
            # (2, TN) blocks: second-to-last dim equals the full dim (=2),
            # last dim is a multiple of 128 -> satisfies the (8,128) rule.
            pl.BlockSpec((2, tn), lambda i: (0, i)),
        ],
        out_specs=pl.BlockSpec((1, tn), lambda i: (0, i)),
        compiler_params=pltpu.CompilerParams(
            # Batch tiles are independent: lets v7x shard across its 2 TCs;
            # harmless no-op on v5e/v6e.
            dimension_semantics=("parallel",),
        ),
    )(params, xT)

    return outT[0, :n].reshape(n, 1)


def init_params(key):
    """Deterministic parameter init matching nn.Linear shapes (transposed)."""
    k1, k2, k3, k4 = jax.random.split(key, 4)
    # Mimic nn.Linear default init: U(-1/sqrt(fan_in), 1/sqrt(fan_in)).
    lim1 = 1.0 / jnp.sqrt(2.0)
    lim2 = 1.0 / jnp.sqrt(5.0)
    w1 = jax.random.uniform(k1, (2, 5), jnp.float32, -lim1, lim1)
    b1 = jax.random.uniform(k2, (1, 5), jnp.float32, -lim1, lim1)
    w2 = jax.random.uniform(k3, (5, 1), jnp.float32, -lim2, lim2)
    b2 = jax.random.uniform(k4, (1, 1), jnp.float32, -lim2, lim2)
    return w1, b1, w2, b2


if __name__ == "__main__":
    key = jax.random.PRNGKey(0)
    kx, kp = jax.random.split(key)

    w1, b1, w2, b2 = init_params(kp)

    # Small batch consistent with the module (in_features=2).
    batch = 8
    x = jax.random.normal(kx, (batch, 2), jnp.float32)
    out = circle_model_v0(x, w1, b1, w2, b2)
    jax.block_until_ready(out)
    ref = (x @ w1 + b1) @ w2 + b2
    assert out.shape == (batch, 1)
    assert jnp.allclose(out, ref, atol=1e-5, rtol=1e-5)

    # Larger batch exercises the pipelined multi-tile grid + padding path.
    xb = jax.random.normal(jax.random.PRNGKey(1), (5000, 2), jnp.float32)
    outb = circle_model_v0(xb, w1, b1, w2, b2)
    jax.block_until_ready(outb)
    refb = (xb @ w1 + b1) @ w2 + b2
    assert outb.shape == (5000, 1)
    assert jnp.allclose(outb, refb, atol=1e-5, rtol=1e-5)

    print("KERNEL_OK")
</pallas_src>

<mosaic_0001>
module attributes {stable_mosaic.version = 11 : i64} {
  func.func @_fused_affine_kernel(%arg0: i32, %arg1: memref<3xf32, #tpu.memory_space<smem>>, %arg2: memref<2x128xf32, #tpu.memory_space<vmem>>, %arg3: memref<1x128xf32, #tpu.memory_space<vmem>>) attributes {dimension_semantics = [#tpu.dimension_semantics<parallel>], iteration_bounds = array<i64: 1>, scalar_prefetch = 0 : i64, scratch_operands = 0 : i64, tpu.core_type = #tpu.core_type<tc>, window_params = [{transform_indices = @transform_0, window_bounds = array<i64: 3>}, {transform_indices = @transform_1, window_bounds = array<i64: 2, 128>}, {transform_indices = @transform_2, window_bounds = array<i64: 1, 128>}]} {
    %c0 = arith.constant 0 : index
    %0 = memref.load %arg1[%c0] : memref<3xf32, #tpu.memory_space<smem>>
    %c1 = arith.constant 1 : index
    %1 = memref.load %arg1[%c1] : memref<3xf32, #tpu.memory_space<smem>>
    %c2 = arith.constant 2 : index
    %2 = memref.load %arg1[%c2] : memref<3xf32, #tpu.memory_space<smem>>
    %c0_0 = arith.constant 0 : index
    %c0_1 = arith.constant 0 : index
    %3 = vector.load %arg2[%c0_0, %c0_1] : memref<2x128xf32, #tpu.memory_space<vmem>>, vector<1x128xf32>
    %c1_2 = arith.constant 1 : index
    %c0_3 = arith.constant 0 : index
    %4 = vector.load %arg2[%c1_2, %c0_3] : memref<2x128xf32, #tpu.memory_space<vmem>>, vector<1x128xf32>
    %5 = vector.broadcast %0 : f32 to vector<1x128xf32>
    %6 = arith.mulf %3, %5 : vector<1x128xf32>
    %7 = vector.broadcast %1 : f32 to vector<1x128xf32>
    %8 = arith.mulf %4, %7 : vector<1x128xf32>
    %9 = arith.addf %6, %8 : vector<1x128xf32>
    %10 = vector.broadcast %2 : f32 to vector<1x128xf32>
    %11 = arith.addf %9, %10 : vector<1x128xf32>
    %c0_4 = arith.constant 0 : index
    %c0_5 = arith.constant 0 : index
    %12 = vector.load %arg3[%c0_4, %c0_5] : memref<1x128xf32, #tpu.memory_space<vmem>>, vector<1x128xf32>
    tpu.vector_store %arg3[%c0_4, %c0_5], %11 {strides = array<i32>} : memref<1x128xf32, #tpu.memory_space<vmem>>, vector<1x128xf32>,
    return
  }
  func.func @transform_0(%arg0: i32) -> i32 {
    %c0_i32 = arith.constant 0 : i32
    %c0_i32_0 = arith.constant 0 : i32
    return %c0_i32 : i32
  }
  func.func @transform_1(%arg0: i32) -> (i32, i32) {
    %c0_i32 = arith.constant 0 : i32
    %c0_i32_0 = arith.constant 0 : i32
    return %c0_i32, %arg0 : i32, i32
  }
  func.func @transform_2(%arg0: i32) -> (i32, i32) {
    %c0_i32 = arith.constant 0 : i32
    %c0_i32_0 = arith.constant 0 : i32
    return %c0_i32, %arg0 : i32, i32
  }
}

</mosaic_0001>

<llo_original>
// kernel: tpu_custom_call.1
$region0: #{tpu_custom_call.1}
  #allocation0 [shape = 'u32[]', space=smem, size = 0x4, offset = 0x4, fixed_abs, tag = 'smem constant byte address 0x4 - core index']
  #allocation1 [shape = 'u32[144,128]{1,0:T(1,128)}', space=vmem, size = 0x12000, scoped, tag = 'internal scratch']
  %s0 = inlined_call_operand.hbm [shape: f32[3], index: 0, kind: input, shape index: {}]
  %s1 = inlined_call_operand.vmem [shape: f32[2,128], index: 1, kind: input, shape index: {}]
  %s2 = inlined_call_operand.hbm [shape: f32[1,128], index: 2, kind: output, shape index: {}]
  %s3 = sld [smem:[#allocation0]]
  $region22: #{tpu_custom_call.1} parent=0
    _
  %s5 = ssub.s32 1, %s3
  %s6 = scalar_select 0, %s5, %s3
  $region1: #{tpu_custom_call.1} parent=0
    #allocation2 [shape = 'u8[512]{0}', space=smem, size = 0x200, scoped, tag = 'input window, operand 0, single buffered']
    #allocation3 [shape = 's32[1]{0}', space=sflag, size = 0x4, scoped, tag = 'scoped memory for tpu_custom_call.1']
    #allocation4 [shape = 's32[1]{0}', space=sflag, size = 0x4, scoped, tag = 'scoped memory for tpu_custom_call.1']
    #allocation5 [shape = 'u8[512]{0}', space=vmem, size = 0x400, scoped, tag = 'output window, operand 0, single buffered']
    %7 = vsyncpa [#allocation4], 0
    %8 = vsyncpa [#allocation3], 0
    // Predicated region
    $region2: #{tpu_custom_call.1} parent=1 // pred_check
      _
    $region3: #{tpu_custom_call.1} parent=1 // pred_check_branch
      %10 = sbr.rel (0) target = $region5
    $region4: #{tpu_custom_call.1} parent=1 // pred_region
      %s12 = ssub.s32 16, 16
      %13 = vsyncadd [#allocation4], %s12
      %16 = dma.hbm_to_smem %s0, 16, [#allocation2], [#allocation4]
    $region5: #{tpu_custom_call.1} parent=1 // pred_fallthru
      _
    // Predicated region
    $region6: #{tpu_custom_call.1} parent=1 // pred_check
      _
    $region7: #{tpu_custom_call.1} parent=1 // pred_check_branch
      %18 = sbr.rel (0) target = $region9
    $region8: #{tpu_custom_call.1} parent=1 // pred_region
      _
    $region9: #{tpu_custom_call.1} parent=1 // pred_fallthru
      _
    // Predicated region
    $region10: #{tpu_custom_call.1} parent=1 // pred_check
      _
    $region11: #{tpu_custom_call.1} parent=1 // pred_check_branch
      %20 = sbr.rel (0) target = $region13
    $region12: #{tpu_custom_call.1} parent=1 // pred_region
      %21 = dma.done [#allocation4], 16
    $region13: #{tpu_custom_call.1} parent=1 // pred_fallthru
      _
    %22 = sfence
    %s23 = sld [smem:[#allocation2]]
    %s24 = sld [smem:[#allocation2 + $0x1]]
    %s25 = sld [smem:[#allocation2 + $0x2]]
    %v26 = vld [vmem:[%s1] sm:$0x1]
    %v27 = vld [vmem:[%s1 + $0x1] sm:$0x1]
    %v28 = vstv %s23
    %v29 = vmul.f32 %v26, %v28
    %v30 = vstv %s24
    %v31 = vmul.f32 %v27, %v30
    %v32 = vadd.f32 %v29, %v31
    %v33 = vstv %s25
    %v34 = vadd.f32 %v32, %v33
    %35 = vst [vmem:[#allocation5] sm:$0x1] %v34
    // Predicated region
    $region14: #{tpu_custom_call.1} parent=1 // pred_check
      _
    $region15: #{tpu_custom_call.1} parent=1 // pred_check_branch
      %37 = sbr.rel (0) target = $region17
    $region16: #{tpu_custom_call.1} parent=1 // pred_region
      %s39 = ssub.s32 16, 16
      %40 = vsyncadd [#allocation3], %s39
      %s42 = sshll.u32 [#allocation5], 4
      %s43 = int_to_ptr.vmem [resolvable:$true] %s42
      %45 = dma.vmem_to_hbm [thread:$0]  %s43, 16, %s2, [#allocation3]
    $region17: #{tpu_custom_call.1} parent=1 // pred_fallthru
      _
    // Predicated region
    $region18: #{tpu_custom_call.1} parent=1 // pred_check
      _
    $region19: #{tpu_custom_call.1} parent=1 // pred_check_branch
      %47 = sbr.rel (0) target = $region21
    $region20: #{tpu_custom_call.1} parent=1 // pred_region
      %48 = dma.done [#allocation3], 16
    $region21: #{tpu_custom_call.1} parent=1 // pred_fallthru
      _
    %49 = vsyncpa [#allocation3], 1
    %50 = vsyncpa [#allocation4], 1

</llo_original>
